<compile_context>
chip_gen: v6e
topology: v6e:2x2x1
jax: 0.10.0
libtpu: 0.0.40
codegen_flags: <defaults>
</compile_context>

<pallas_src>
import functools
import math

import jax
import jax.numpy as jnp
from jax import lax
from jax.experimental import pallas as pl
from jax.experimental.pallas import tpu as pltpu


# "NT" dot: contract the last dim of both operands (rhs kept in natural
# (c_out, c_in) layout -> transposed weight push on the MXU).
_NT_DIMS = (((1,), (1,)), ((), ()))


# ---------------------------------------------------------------------------
# Fused kernel: per (i, j) output tile, loop over k accumulating two matmuls
# (x @ W.T  and  [m; s] @ |W.T|).
# ---------------------------------------------------------------------------
def _linear_m_kernel(x_ref, m_ref, s_ref, w_ref, b_ref,
                     xo_ref, mo_ref,
                     acc_x, acc_ms, *, act, compute_dtype):
    k = pl.program_id(2)

    @pl.when(k == 0)
    def _():
        acc_x[...] = jnp.zeros_like(acc_x)
        acc_ms[...] = jnp.zeros_like(acc_ms)

    w = w_ref[...]                                     # (tn, tk), natural layout
    x = x_ref[...]                                     # (tm, tk)
    # Stack m and s along the sublane axis so |W| is pushed into the MXU once.
    ms = jnp.concatenate([m_ref[...], s_ref[...]], axis=0)   # (2*tm, tk)

    if compute_dtype is not None:
        w = w.astype(compute_dtype)
        x = x.astype(compute_dtype)
        ms = ms.astype(compute_dtype)

    w_abs = jnp.abs(w)                                 # |W| tile, VPU, in VMEM

    acc_x[...] += lax.dot_general(x, w, _NT_DIMS,
                                  preferred_element_type=jnp.float32)
    acc_ms[...] += lax.dot_general(ms, w_abs, _NT_DIMS,
                                   preferred_element_type=jnp.float32)

    @pl.when(k == pl.num_programs(2) - 1)
    def _():
        y = acc_x[...] + b_ref[...].astype(jnp.float32)      # (tm,tn)+(1,tn)
        if act is not None:
            y = act(y)
        xo_ref[...] = y.astype(xo_ref.dtype)

        tm = acc_x.shape[0]
        ms_acc = acc_ms[...]
        mo_ref[...] = (ms_acc[:tm, :] / ms_acc[tm:, :]).astype(mo_ref.dtype)


# ---------------------------------------------------------------------------
# Helpers
# ---------------------------------------------------------------------------
def _cdiv(a, b):
    return (a + b - 1) // b


def _round_up(a, b):
    return _cdiv(a, b) * b


def _pick_tile(dim, unit, max_tile):
    """Balanced tile: near-equal split when dim > max_tile, aligned to unit."""
    if dim <= max_tile:
        return _round_up(dim, unit)
    n_tiles = _cdiv(dim, max_tile)
    return _round_up(_cdiv(dim, n_tiles), unit)


def _pad2(a, rows, cols):
    r, c = a.shape
    if r == rows and c == cols:
        return a
    return jnp.pad(a, ((0, rows - r), (0, cols - c)))


# ---------------------------------------------------------------------------
# Linear_M forward
# ---------------------------------------------------------------------------
def linear_m_forward(x, m, s, weight, bias=None, act=None, compute_dtype=None):
    """x, m, s: (..., c_in); weight: (c_out, c_in); bias: (c_out,) or None.

    Returns (act(x @ W.T + b), (m @ |W.T|) / (s @ |W.T|), ones).
    compute_dtype: optional matmul operand dtype (e.g. jnp.bfloat16);
    accumulation is always f32.
    """
    c_out, c_in = weight.shape
    lead = x.shape[:-1]
    rows = math.prod(lead) if lead else 1

    x2 = x.reshape(rows, c_in)
    m2 = m.reshape(rows, c_in)
    s2 = s.reshape(rows, c_in)
    b2 = (bias if bias is not None
          else jnp.zeros((c_out,), x.dtype)).reshape(1, c_out)

    # --- tile selection: lane-dense N/K, sublane-aligned M ------------------
    # tn gets the biggest budget (activation HBM re-reads scale with N/tn);
    # caps chosen so the f32 working set (~24 MiB) fits v7x's 64 MiB VMEM.
    tm = _pick_tile(rows, 8, 512)
    tn = _pick_tile(c_out, 128, 1024)
    tk = _pick_tile(c_in, 128, 512)

    rows_p = _round_up(rows, tm)
    n_p = _round_up(c_out, tn)
    k_p = _round_up(c_in, tk)

    # Zero-pad to tiled shapes (zeros contribute nothing to the matmuls;
    # padded m/s regions give 0/0 = NaN but are sliced away below).
    x2 = _pad2(x2, rows_p, k_p)
    m2 = _pad2(m2, rows_p, k_p)
    s2 = _pad2(s2, rows_p, k_p)
    w2 = _pad2(weight, n_p, k_p)          # keep natural (c_out, c_in) layout
    b2 = _pad2(b2, 1, n_p)

    grid = (rows_p // tm, n_p // tn, k_p // tk)
    kernel = functools.partial(_linear_m_kernel, act=act,
                               compute_dtype=compute_dtype)

    x_out, m_out = pl.pallas_call(
        kernel,
        out_shape=(
            jax.ShapeDtypeStruct((rows_p, n_p), x.dtype),
            jax.ShapeDtypeStruct((rows_p, n_p), m.dtype),
        ),
        grid_spec=pltpu.PrefetchScalarGridSpec(
            num_scalar_prefetch=0,
            grid=grid,
            in_specs=[
                pl.BlockSpec((tm, tk), lambda i, j, k: (i, k)),   # x
                pl.BlockSpec((tm, tk), lambda i, j, k: (i, k)),   # m
                pl.BlockSpec((tm, tk), lambda i, j, k: (i, k)),   # s
                pl.BlockSpec((tn, tk), lambda i, j, k: (j, k)),   # W (natural)
                pl.BlockSpec((1, tn), lambda i, j, k: (0, j)),    # bias
            ],
            out_specs=(
                pl.BlockSpec((tm, tn), lambda i, j, k: (i, j)),   # y
                pl.BlockSpec((tm, tn), lambda i, j, k: (i, j)),   # m/s
            ),
            scratch_shapes=[
                pltpu.VMEM((tm, tn), jnp.float32),        # acc_x
                pltpu.VMEM((2 * tm, tn), jnp.float32),    # acc_[m;s]
            ],
        ),
        compiler_params=pltpu.CompilerParams(
            dimension_semantics=("parallel", "parallel", "arbitrary"),
            # ~24 MiB worst-case working set; stay comfortably under v7x's
            # 64 MiB physical VMEM, above v5e's 16 MiB default scoped limit.
            vmem_limit_bytes=48 * 1024 * 1024,
        ),
    )(x2, m2, s2, w2, b2)

    out_shape = (*lead, c_out)
    x_out = x_out[:rows, :c_out].reshape(out_shape)
    m_out = m_out[:rows, :c_out].reshape(out_shape)
    ones_out = jnp.ones(out_shape, s.dtype)       # constant; no kernel traffic
    return x_out, m_out, ones_out


# ---------------------------------------------------------------------------
# Pure-JAX reference for the sanity check
# ---------------------------------------------------------------------------
def _reference(x, m, s, weight, bias, act):
    y = jnp.einsum("...i,oi->...o", x, weight)
    if bias is not None:
        y = y + bias
    if act is not None:
        y = act(y)
    wt_abs = jnp.abs(weight).T
    m_new = jnp.einsum("...i,io->...o", m, wt_abs)
    s_new = jnp.einsum("...i,io->...o", s, wt_abs)
    return y, m_new / s_new, jnp.ones_like(s_new)


def _check(out, ref, atol, rtol):
    for a_, r_ in zip(out, ref):
        assert a_.shape == r_.shape, (a_.shape, r_.shape)
        assert jnp.allclose(a_, r_, atol=atol, rtol=rtol), \
            float(jnp.max(jnp.abs(a_ - r_)))


if __name__ == "__main__":
    key = jax.random.PRNGKey(0)
    ks = jax.random.split(key, 9)

    # ---- case 1: default Linear_M (bias=True, act=None) --------------------
    B, S, c_in, c_out = 2, 8, 32, 64
    x = jax.random.normal(ks[0], (B, S, c_in), jnp.float32)
    m = jax.random.normal(ks[1], (B, S, c_in), jnp.float32)
    s = jax.random.uniform(ks[2], (B, S, c_in), jnp.float32) + 0.5
    w = jax.random.normal(ks[3], (c_out, c_in), jnp.float32) * 0.1
    b = jax.random.normal(ks[4], (c_out,), jnp.float32) * 0.1

    out = linear_m_forward(x, m, s, w, b, act=None)
    jax.block_until_ready(out)
    _check(out, _reference(x, m, s, w, b, None), atol=1e-4, rtol=1e-4)

    # ---- case 2: bias=False, act=relu, ragged dims (exercise padding) ------
    c_in2, c_out2 = 48, 40
    x2 = jax.random.normal(ks[5], (4, 16, c_in2), jnp.float32)
    m2 = jax.random.normal(ks[6], (4, 16, c_in2), jnp.float32)
    s2 = jax.random.uniform(ks[7], (4, 16, c_in2), jnp.float32) + 0.5
    w2 = jax.random.normal(ks[8], (c_out2, c_in2), jnp.float32) * 0.1

    out2 = linear_m_forward(x2, m2, s2, w2, None, act=jax.nn.relu)
    jax.block_until_ready(out2)
    _check(out2, _reference(x2, m2, s2, w2, None, jax.nn.relu),
           atol=1e-4, rtol=1e-4)

    # ---- case 3: bf16 MXU path (f32 accumulation), looser tolerance --------
    out3 = linear_m_forward(x, m, s, w, b, act=None,
                            compute_dtype=jnp.bfloat16)
    jax.block_until_ready(out3)
    _check(out3, _reference(x, m, s, w, b, None), atol=3e-2, rtol=3e-2)

    print("KERNEL_OK")
</pallas_src>

<mosaic_0001>
module attributes {stable_mosaic.version = 11 : i64} {
  func.func @_linear_m_kernel(%arg0: i32, %arg1: i32, %arg2: i32, %arg3: memref<16x128xf32, #tpu.memory_space<vmem>>, %arg4: memref<16x128xf32, #tpu.memory_space<vmem>>, %arg5: memref<16x128xf32, #tpu.memory_space<vmem>>, %arg6: memref<128x128xf32, #tpu.memory_space<vmem>>, %arg7: memref<1x128xf32, #tpu.memory_space<vmem>>, %arg8: memref<16x128xf32, #tpu.memory_space<vmem>>, %arg9: memref<16x128xf32, #tpu.memory_space<vmem>>, %arg10: memref<16x128xf32, #tpu.memory_space<vmem>>, %arg11: memref<32x128xf32, #tpu.memory_space<vmem>>) attributes {dimension_semantics = [#tpu.dimension_semantics<parallel>, #tpu.dimension_semantics<parallel>, #tpu.dimension_semantics<arbitrary>], iteration_bounds = array<i64: 1, 1, 1>, scalar_prefetch = 0 : i64, scratch_operands = 2 : i64, tpu.core_type = #tpu.core_type<tc>, window_params = [{transform_indices = @transform_0, window_bounds = array<i64: 16, 128>}, {transform_indices = @transform_1, window_bounds = array<i64: 16, 128>}, {transform_indices = @transform_2, window_bounds = array<i64: 16, 128>}, {transform_indices = @transform_3, window_bounds = array<i64: 128, 128>}, {transform_indices = @transform_4, window_bounds = array<i64: 1, 128>}, {transform_indices = @transform_5, window_bounds = array<i64: 16, 128>}, {transform_indices = @transform_6, window_bounds = array<i64: 16, 128>}]} {
    %c0_i32 = arith.constant 0 : i32
    %0 = arith.cmpi eq, %arg2, %c0_i32 : i32
    %1 = arith.extui %0 : i1 to i32
    %c0_i32_0 = arith.constant 0 : i32
    %2 = arith.cmpi ne, %1, %c0_i32_0 : i32
    scf.if %2 {
      %cst_19 = arith.constant 0.000000e+00 : f32
      %20 = vector.broadcast %cst_19 : f32 to vector<16x128xf32>
      %c0_20 = arith.constant 0 : index
      %c0_21 = arith.constant 0 : index
      %21 = vector.load %arg10[%c0_20, %c0_21] : memref<16x128xf32, #tpu.memory_space<vmem>>, vector<16x128xf32>
      tpu.vector_store %arg10[%c0_20, %c0_21], %20 {strides = array<i32>} : memref<16x128xf32, #tpu.memory_space<vmem>>, vector<16x128xf32>,
      %cst_22 = arith.constant 0.000000e+00 : f32
      %22 = vector.broadcast %cst_22 : f32 to vector<32x128xf32>
      %c0_23 = arith.constant 0 : index
      %c0_24 = arith.constant 0 : index
      %23 = vector.load %arg11[%c0_23, %c0_24] : memref<32x128xf32, #tpu.memory_space<vmem>>, vector<32x128xf32>
      tpu.vector_store %arg11[%c0_23, %c0_24], %22 {strides = array<i32>} : memref<32x128xf32, #tpu.memory_space<vmem>>, vector<32x128xf32>,
    } else {
    }
    %c0 = arith.constant 0 : index
    %c0_1 = arith.constant 0 : index
    %3 = vector.load %arg6[%c0, %c0_1] : memref<128x128xf32, #tpu.memory_space<vmem>>, vector<128x128xf32>
    %c0_2 = arith.constant 0 : index
    %c0_3 = arith.constant 0 : index
    %4 = vector.load %arg3[%c0_2, %c0_3] : memref<16x128xf32, #tpu.memory_space<vmem>>, vector<16x128xf32>
    %c0_4 = arith.constant 0 : index
    %c0_5 = arith.constant 0 : index
    %5 = vector.load %arg4[%c0_4, %c0_5] : memref<16x128xf32, #tpu.memory_space<vmem>>, vector<16x128xf32>
    %c0_6 = arith.constant 0 : index
    %c0_7 = arith.constant 0 : index
    %6 = vector.load %arg5[%c0_6, %c0_7] : memref<16x128xf32, #tpu.memory_space<vmem>>, vector<16x128xf32>
    %7 = tpu.concatenate %5, %6 in 0 : vector<16x128xf32>, vector<16x128xf32> -> vector<32x128xf32>
    %8 = math.absf %3 : vector<128x128xf32>
    %c0_8 = arith.constant 0 : index
    %c0_9 = arith.constant 0 : index
    %9 = vector.load %arg10[%c0_8, %c0_9] : memref<16x128xf32, #tpu.memory_space<vmem>>, vector<16x128xf32>
    %cst = arith.constant dense<0.000000e+00> : vector<16x128xf32>
    %10 = tpu.matmul %4, %3, %cst {dimension_numbers = #tpu.dot_dimension_numbers<[1], [1], [0], [0], [0, 0, 1, 0], [], []>} : vector<16x128xf32>, vector<128x128xf32>, vector<16x128xf32> -> vector<16x128xf32>
    %11 = arith.addf %9, %10 : vector<16x128xf32>
    %c0_10 = arith.constant 0 : index
    %c0_11 = arith.constant 0 : index
    %12 = vector.load %arg10[%c0_10, %c0_11] : memref<16x128xf32, #tpu.memory_space<vmem>>, vector<16x128xf32>
    tpu.vector_store %arg10[%c0_10, %c0_11], %11 {strides = array<i32>} : memref<16x128xf32, #tpu.memory_space<vmem>>, vector<16x128xf32>,
    %c0_12 = arith.constant 0 : index
    %c0_13 = arith.constant 0 : index
    %13 = vector.load %arg11[%c0_12, %c0_13] : memref<32x128xf32, #tpu.memory_space<vmem>>, vector<32x128xf32>
    %cst_14 = arith.constant dense<0.000000e+00> : vector<32x128xf32>
    %14 = tpu.matmul %7, %8, %cst_14 {dimension_numbers = #tpu.dot_dimension_numbers<[1], [1], [0], [0], [0, 0, 1, 0], [], []>} : vector<32x128xf32>, vector<128x128xf32>, vector<32x128xf32> -> vector<32x128xf32>
    %15 = arith.addf %13, %14 : vector<32x128xf32>
    %c0_15 = arith.constant 0 : index
    %c0_16 = arith.constant 0 : index
    %16 = vector.load %arg11[%c0_15, %c0_16] : memref<32x128xf32, #tpu.memory_space<vmem>>, vector<32x128xf32>
    tpu.vector_store %arg11[%c0_15, %c0_16], %15 {strides = array<i32>} : memref<32x128xf32, #tpu.memory_space<vmem>>, vector<32x128xf32>,
    %c0_i32_17 = arith.constant 0 : i32
    %17 = arith.cmpi eq, %arg2, %c0_i32_17 : i32
    %18 = arith.extui %17 : i1 to i32
    %c0_i32_18 = arith.constant 0 : i32
    %19 = arith.cmpi ne, %18, %c0_i32_18 : i32
    scf.if %19 {
      %c0_19 = arith.constant 0 : index
      %c0_20 = arith.constant 0 : index
      %20 = vector.load %arg10[%c0_19, %c0_20] : memref<16x128xf32, #tpu.memory_space<vmem>>, vector<16x128xf32>
      %c0_21 = arith.constant 0 : index
      %c0_22 = arith.constant 0 : index
      %21 = vector.load %arg7[%c0_21, %c0_22] : memref<1x128xf32, #tpu.memory_space<vmem>>, vector<1x128xf32>
      %22 = vector.broadcast %21 : vector<1x128xf32> to vector<16x128xf32>
      %23 = arith.addf %20, %22 : vector<16x128xf32>
      %c0_23 = arith.constant 0 : index
      %c0_24 = arith.constant 0 : index
      %24 = vector.load %arg8[%c0_23, %c0_24] : memref<16x128xf32, #tpu.memory_space<vmem>>, vector<16x128xf32>
      tpu.vector_store %arg8[%c0_23, %c0_24], %23 {strides = array<i32>} : memref<16x128xf32, #tpu.memory_space<vmem>>, vector<16x128xf32>,
      %c0_25 = arith.constant 0 : index
      %c0_26 = arith.constant 0 : index
      %25 = vector.load %arg11[%c0_25, %c0_26] : memref<32x128xf32, #tpu.memory_space<vmem>>, vector<32x128xf32>
      %26 = vector.extract_strided_slice %25 {offsets = [0, 0], sizes = [16, 128], strides = [1, 1]} : vector<32x128xf32> to vector<16x128xf32>
      %27 = vector.extract_strided_slice %25 {offsets = [16, 0], sizes = [16, 128], strides = [1, 1]} : vector<32x128xf32> to vector<16x128xf32>
      %28 = arith.divf %26, %27 : vector<16x128xf32>
      %c0_27 = arith.constant 0 : index
      %c0_28 = arith.constant 0 : index
      %29 = vector.load %arg9[%c0_27, %c0_28] : memref<16x128xf32, #tpu.memory_space<vmem>>, vector<16x128xf32>
      tpu.vector_store %arg9[%c0_27, %c0_28], %28 {strides = array<i32>} : memref<16x128xf32, #tpu.memory_space<vmem>>, vector<16x128xf32>,
    } else {
    }
    return
  }
  func.func @transform_0(%arg0: i32, %arg1: i32, %arg2: i32) -> (i32, i32) {
    %c0_i32 = arith.constant 0 : i32
    return %arg0, %arg2 : i32, i32
  }
  func.func @transform_1(%arg0: i32, %arg1: i32, %arg2: i32) -> (i32, i32) {
    %c0_i32 = arith.constant 0 : i32
    return %arg0, %arg2 : i32, i32
  }
  func.func @transform_2(%arg0: i32, %arg1: i32, %arg2: i32) -> (i32, i32) {
    %c0_i32 = arith.constant 0 : i32
    return %arg0, %arg2 : i32, i32
  }
  func.func @transform_3(%arg0: i32, %arg1: i32, %arg2: i32) -> (i32, i32) {
    %c0_i32 = arith.constant 0 : i32
    return %arg1, %arg2 : i32, i32
  }
  func.func @transform_4(%arg0: i32, %arg1: i32, %arg2: i32) -> (i32, i32) {
    %c0_i32 = arith.constant 0 : i32
    %c0_i32_0 = arith.constant 0 : i32
    return %c0_i32, %arg1 : i32, i32
  }
  func.func @transform_5(%arg0: i32, %arg1: i32, %arg2: i32) -> (i32, i32) {
    %c0_i32 = arith.constant 0 : i32
    return %arg0, %arg1 : i32, i32
  }
  func.func @transform_6(%arg0: i32, %arg1: i32, %arg2: i32) -> (i32, i32) {
    %c0_i32 = arith.constant 0 : i32
    return %arg0, %arg1 : i32, i32
  }
}

</mosaic_0001>

<llo_original>
// kernel: tpu_custom_call.1
$region0: #{tpu_custom_call.1}
  #allocation0 [shape = 'u32[]', space=smem, size = 0x4, offset = 0x4, fixed_abs, tag = 'smem constant byte address 0x4 - core index']
  #allocation1 [shape = 'u32[144,128]{1,0:T(1,128)}', space=vmem, size = 0x12000, scoped, tag = 'internal scratch']
  #allocation2 [shape = 'f32[16,128]{1,0:T(8,128)}', space=vmem, size = 0x2000, scoped, tag = 'scratch operand']
  #allocation3 [shape = 'f32[32,128]{1,0:T(8,128)}', space=vmem, size = 0x4000, scoped, tag = 'scratch operand']
  %s0 = inlined_call_operand.hbm [shape: f32[16,128], index: 0, kind: input, shape index: {}]
  %s1 = inlined_call_operand.hbm [shape: f32[16,128], index: 1, kind: input, shape index: {}]
  %s2 = inlined_call_operand.hbm [shape: f32[16,128], index: 2, kind: input, shape index: {}]
  %s3 = inlined_call_operand.hbm [shape: f32[128,128], index: 3, kind: input, shape index: {}]
  %s4 = inlined_call_operand.vmem [shape: f32[1,128], index: 4, kind: input, shape index: {}]
  %s5 = inlined_call_operand.hbm [shape: f32[16,128], index: 5, kind: output, shape index: {0}]
  %s6 = inlined_call_operand.hbm [shape: f32[16,128], index: 6, kind: output, shape index: {1}]
  %7 = xla_tuple %s5, %s6
  %s8 = sld [smem:[#allocation0]]
  $region62: #{tpu_custom_call.1} parent=0
    _
  %s10 = ssub.s32 1, %s8
  %s11 = scalar_select 0, %s10, %s8
  $region1: #{tpu_custom_call.1} parent=0
    #allocation4 [shape = 'u8[8192]{0}', space=vmem, size = 0x2000, scoped, tag = 'input window, operand 0, single buffered']
    #allocation5 [shape = 's32[1]{0}', space=sflag, size = 0x4, scoped, tag = 'scoped memory for tpu_custom_call.1']
    #allocation6 [shape = 's32[1]{0}', space=sflag, size = 0x4, scoped, tag = 'scoped memory for tpu_custom_call.1']
    #allocation7 [shape = 'u8[8192]{0}', space=vmem, size = 0x2000, scoped, tag = 'input window, operand 1, single buffered']
    #allocation8 [shape = 's32[1]{0}', space=sflag, size = 0x4, scoped, tag = 'scoped memory for tpu_custom_call.1']
    #allocation9 [shape = 'u8[8192]{0}', space=vmem, size = 0x2000, scoped, tag = 'input window, operand 2, single buffered']
    #allocation10 [shape = 'u8[65536]{0}', space=vmem, size = 0x10000, scoped, tag = 'input window, operand 3, single buffered']
    #allocation11 [shape = 's32[1]{0}', space=sflag, size = 0x4, scoped, tag = 'scoped memory for tpu_custom_call.1']
    #allocation12 [shape = 'u8[8192]{0}', space=vmem, size = 0x2000, scoped, tag = 'output window, operand 0, single buffered']
    #allocation13 [shape = 'u8[8192]{0}', space=vmem, size = 0x2000, scoped, tag = 'output window, operand 1, single buffered']
    #allocation14 [shape = 's32[1]{0}', space=sflag, size = 0x4, scoped, tag = 'scoped memory for tpu_custom_call.1']
    %12 = vsyncpa [#allocation5], 0
    %13 = vsyncpa [#allocation8], 0
    %14 = vsyncpa [#allocation11], 0
    %15 = vsyncpa [#allocation6], 0
    %16 = vsyncpa [#allocation14], 0
    // Predicated region
    $region2: #{tpu_custom_call.1} parent=1 // pred_check
      _
    $region3: #{tpu_custom_call.1} parent=1 // pred_check_branch
      %18 = sbr.rel (0) target = $region5
    $region4: #{tpu_custom_call.1} parent=1 // pred_region
      %s20 = ssub.s32 256, 256
      %21 = vsyncadd [#allocation5], %s20
      %s22 = sshll.u32 [#allocation4], 4
      %s23 = int_to_ptr.vmem [resolvable:$true] %s22
      %28 = dma.hbm_to_vmem [thread:$0]  %s0, 256, %s23, [#allocation5], 128, 128, 8
    $region5: #{tpu_custom_call.1} parent=1 // pred_fallthru
      _
    // Predicated region
    $region6: #{tpu_custom_call.1} parent=1 // pred_check
      _
    $region7: #{tpu_custom_call.1} parent=1 // pred_check_branch
      %30 = sbr.rel (0) target = $region9
    $region8: #{tpu_custom_call.1} parent=1 // pred_region
      %s32 = ssub.s32 256, 256
      %33 = vsyncadd [#allocation8], %s32
      %s34 = sshll.u32 [#allocation7], 4
      %s35 = int_to_ptr.vmem [resolvable:$true] %s34
      %40 = dma.hbm_to_vmem [thread:$0]  %s1, 256, %s35, [#allocation8], 128, 128, 8
    $region9: #{tpu_custom_call.1} parent=1 // pred_fallthru
      _
    // Predicated region
    $region10: #{tpu_custom_call.1} parent=1 // pred_check
      _
    $region11: #{tpu_custom_call.1} parent=1 // pred_check_branch
      %42 = sbr.rel (0) target = $region13
    $region12: #{tpu_custom_call.1} parent=1 // pred_region
      %s44 = ssub.s32 256, 256
      %45 = vsyncadd [#allocation8], %s44
      %s46 = sshll.u32 [#allocation9], 4
      %s47 = int_to_ptr.vmem [resolvable:$true] %s46
      %52 = dma.hbm_to_vmem [thread:$0]  %s2, 256, %s47, [#allocation8], 128, 128, 8
    $region13: #{tpu_custom_call.1} parent=1 // pred_fallthru
      _
    // Predicated region
    $region14: #{tpu_custom_call.1} parent=1 // pred_check
      _
    $region15: #{tpu_custom_call.1} parent=1 // pred_check_branch
      %54 = sbr.rel (0) target = $region17
    $region16: #{tpu_custom_call.1} parent=1 // pred_region
      %s56 = ssub.s32 2048, 2048
      %57 = vsyncadd [#allocation11], %s56
      %s58 = sshll.u32 [#allocation10], 4
      %s59 = int_to_ptr.vmem [resolvable:$true] %s58
      %64 = dma.hbm_to_vmem [thread:$0]  %s3, 2048, %s59, [#allocation11], 128, 128, 8
    $region17: #{tpu_custom_call.1} parent=1 // pred_fallthru
      _
    // Predicated region
    $region18: #{tpu_custom_call.1} parent=1 // pred_check
      _
    $region19: #{tpu_custom_call.1} parent=1 // pred_check_branch
      %66 = sbr.rel (0) target = $region21
    $region20: #{tpu_custom_call.1} parent=1 // pred_region
      _
    $region21: #{tpu_custom_call.1} parent=1 // pred_fallthru
      _
    // Predicated region
    $region22: #{tpu_custom_call.1} parent=1 // pred_check
      _
    $region23: #{tpu_custom_call.1} parent=1 // pred_check_branch
      %68 = sbr.rel (0) target = $region25
    $region24: #{tpu_custom_call.1} parent=1 // pred_region
      %69 = dma.done [#allocation5], 256
    $region25: #{tpu_custom_call.1} parent=1 // pred_fallthru
      _
    // Predicated region
    $region26: #{tpu_custom_call.1} parent=1 // pred_check
      _
    $region27: #{tpu_custom_call.1} parent=1 // pred_check_branch
      %71 = sbr.rel (0) target = $region29
    $region28: #{tpu_custom_call.1} parent=1 // pred_region
      %72 = dma.done [#allocation8], 256
    $region29: #{tpu_custom_call.1} parent=1 // pred_fallthru
      _
    // Predicated region
    $region30: #{tpu_custom_call.1} parent=1 // pred_check
      _
    $region31: #{tpu_custom_call.1} parent=1 // pred_check_branch
      %74 = sbr.rel (0) target = $region33
    $region32: #{tpu_custom_call.1} parent=1 // pred_region
      %75 = dma.done [#allocation8], 256
    $region33: #{tpu_custom_call.1} parent=1 // pred_fallthru
      _
    // Predicated region
    $region34: #{tpu_custom_call.1} parent=1 // pred_check
      _
    $region35: #{tpu_custom_call.1} parent=1 // pred_check_branch
      %77 = sbr.rel (0) target = $region37
    $region36: #{tpu_custom_call.1} parent=1 // pred_region
      %78 = dma.done [#allocation11], 2048
    $region37: #{tpu_custom_call.1} parent=1 // pred_fallthru
      _
    %p79 = scmp.eq.s32.totalorder 0, 0
    // Predicated region
    $region38: #{tpu_custom_call.1} parent=1 // pred_check
      %p80 = pneg %p79
    $region39: #{tpu_custom_call.1} parent=1 // pred_check_branch
      %82 = sbr.rel (%p80) target = $region41
    $region40: #{tpu_custom_call.1} parent=1 // pred_region
      %83 = vst [vmem:[#allocation2] sm:$0xff] 0.0
      %84 = vst [vmem:[#allocation2 + $0x8] sm:$0xff] 0.0
      %85 = vst [vmem:[#allocation3] sm:$0xff] 0.0
      %86 = vst [vmem:[#allocation3 + $0x8] sm:$0xff] 0.0
      %87 = vst [vmem:[#allocation3 + $0x10] sm:$0xff] 0.0
      %88 = vst [vmem:[#allocation3 + $0x18] sm:$0xff] 0.0
    $region41: #{tpu_custom_call.1} parent=1 // pred_fallthru
      _
    %v89 = vld [vmem:[#allocation10] sm:$0xff]
    %v90 = vld [vmem:[#allocation10 + $0x8] sm:$0xff]
    %v91 = vld [vmem:[#allocation10 + $0x10] sm:$0xff]
    %v92 = vld [vmem:[#allocation10 + $0x18] sm:$0xff]
    %v93 = vld [vmem:[#allocation10 + $0x20] sm:$0xff]
    %v94 = vld [vmem:[#allocation10 + $0x28] sm:$0xff]
    %v95 = vld [vmem:[#allocation10 + $0x30] sm:$0xff]
    %v96 = vld [vmem:[#allocation10 + $0x38] sm:$0xff]
    %v97 = vld [vmem:[#allocation10 + $0x40] sm:$0xff]
    %v98 = vld [vmem:[#allocation10 + $0x48] sm:$0xff]
    %v99 = vld [vmem:[#allocation10 + $0x50] sm:$0xff]
    %v100 = vld [vmem:[#allocation10 + $0x58] sm:$0xff]
    %v101 = vld [vmem:[#allocation10 + $0x60] sm:$0xff]
    %v102 = vld [vmem:[#allocation10 + $0x68] sm:$0xff]
    %v103 = vld [vmem:[#allocation10 + $0x70] sm:$0xff]
    %v104 = vld [vmem:[#allocation10 + $0x78] sm:$0xff]
    %v105 = vld [vmem:[#allocation4] sm:$0xff]
    %v106 = vld [vmem:[#allocation4 + $0x8] sm:$0xff]
    %v107 = vld [vmem:[#allocation7] sm:$0xff]
    %v108 = vld [vmem:[#allocation7 + $0x8] sm:$0xff]
    %v109 = vld [vmem:[#allocation9] sm:$0xff]
    %v110 = vld [vmem:[#allocation9 + $0x8] sm:$0xff]
    %v111 = vand.u32 2147483647, %v89
    %v112 = vand.u32 2147483647, %v90
    %v113 = vand.u32 2147483647, %v91
    %v114 = vand.u32 2147483647, %v92
    %v115 = vand.u32 2147483647, %v93
    %v116 = vand.u32 2147483647, %v94
    %v117 = vand.u32 2147483647, %v95
    %v118 = vand.u32 2147483647, %v96
    %v119 = vand.u32 2147483647, %v97
    %v120 = vand.u32 2147483647, %v98
    %v121 = vand.u32 2147483647, %v99
    %v122 = vand.u32 2147483647, %v100
    %v123 = vand.u32 2147483647, %v101
    %v124 = vand.u32 2147483647, %v102
    %v125 = vand.u32 2147483647, %v103
    %v126 = vand.u32 2147483647, %v104
    %v127 = vld [vmem:[#allocation2] sm:$0xff]
    %v128 = vld [vmem:[#allocation2 + $0x8] sm:$0xff]
    %129 = vmatprep.subr.mxu0 0.0
    %130 = vmatpush1.xpose.msra.mxu0 %v104
    %131 = vmatprep.subr.mxu0 0.0
    %132 = vmatpush1.xpose.msra.mxu0 %v103
    %133 = vmatprep.subr.mxu0 0.0
    %134 = vmatpush1.xpose.msra.mxu0 %v102
    %135 = vmatprep.subr.mxu0 0.0
    %136 = vmatpush1.xpose.msra.mxu0 %v101
    %137 = vmatprep.subr.mxu0 0.0
    %138 = vmatpush1.xpose.msra.mxu0 %v100
    %139 = vmatprep.subr.mxu0 0.0
    %140 = vmatpush1.xpose.msra.mxu0 %v99
    %141 = vmatprep.subr.mxu0 0.0
    %142 = vmatpush1.xpose.msra.mxu0 %v98
    %143 = vmatprep.subr.mxu0 0.0
    %144 = vmatpush1.xpose.msra.mxu0 %v97
    %145 = vmatprep.subr.mxu0 0.0
    %146 = vmatpush1.xpose.msra.mxu0 %v96
    %147 = vmatprep.subr.mxu0 0.0
    %148 = vmatpush1.xpose.msra.mxu0 %v95
    %149 = vmatprep.subr.mxu0 0.0
    %150 = vmatpush1.xpose.msra.mxu0 %v94
    %151 = vmatprep.subr.mxu0 0.0
    %152 = vmatpush1.xpose.msra.mxu0 %v93
    %153 = vmatprep.subr.mxu0 0.0
    %154 = vmatpush1.xpose.msra.mxu0 %v92
    %155 = vmatprep.subr.mxu0 0.0
    %156 = vmatpush1.xpose.msra.mxu0 %v91
    %157 = vmatprep.subr.mxu0 0.0
    %158 = vmatpush1.xpose.msra.mxu0 %v90
    %159 = vmatprep.subr.mxu0 0.0
    %160 = vmatpush1.xpose.msra.mxu0 %v89
    %161 = vmatprep.subr.mxu0 0.0
    %162 = vmatpush2.xpose.msra.mxu0 0.0
    %163 = vmatprep.subr.mxu0 0.0
    %164 = vmatpush2.xpose.msra.mxu0 0.0
    %165 = vmatprep.subr.mxu0 0.0
    %166 = vmatpush2.xpose.msra.mxu0 0.0
    %167 = vmatprep.subr.mxu0 0.0
    %168 = vmatpush2.xpose.msra.mxu0 0.0
    %169 = vmatprep.subr.mxu0 0.0
    %170 = vmatpush2.xpose.msra.mxu0 0.0
    %171 = vmatprep.subr.mxu0 0.0
    %172 = vmatpush2.xpose.msra.mxu0 0.0
    %173 = vmatprep.subr.mxu0 0.0
    %174 = vmatpush2.xpose.msra.mxu0 0.0
    %175 = vmatprep.subr.mxu0 0.0
    %176 = vmatpush2.xpose.msra.mxu0 0.0
    %177 = vmatprep.subr.mxu0 0.0
    %178 = vmatpush2.xpose.msra.mxu0 0.0
    %179 = vmatprep.subr.mxu0 0.0
    %180 = vmatpush2.xpose.msra.mxu0 0.0
    %181 = vmatprep.subr.mxu0 0.0
    %182 = vmatpush2.xpose.msra.mxu0 0.0
    %183 = vmatprep.subr.mxu0 0.0
    %184 = vmatpush2.xpose.msra.mxu0 0.0
    %185 = vmatprep.subr.mxu0 0.0
    %186 = vmatpush2.xpose.msra.mxu0 0.0
    %187 = vmatprep.subr.mxu0 0.0
    %188 = vmatpush2.xpose.msra.mxu0 0.0
    %189 = vmatprep.subr.mxu0 0.0
    %190 = vmatpush2.xpose.msra.mxu0 0.0
    %191 = vmatprep.subr.mxu0 0.0
    %192 = vmatpush2.xpose.msra.mxu0 0.0
    %193 = vmatprep.mubr.f32.mxu0 0.0
    %194 = vmatmul.mubr.f32.gmra.mxu0 %v105
    %v195 = vpop.f32.mrf.mxu0
    %v196 = vadd.f32 0.0, %v195
    %v197 = vpop.f32.mrf.mxu0
    %198 = vmatprep.mubr.f32.mxu0 0.0
    %199 = vmatmul.mubr.f32.gmra.mxu0 %v106
    %v200 = vpop.f32.mrf.mxu0
    %v201 = vadd.f32 0.0, %v200
    %v202 = vpop.f32.mrf.mxu0
    %203 = vdwg.mxu0
    %v204 = vadd.f32 %v127, %v196
    %v205 = vadd.f32 %v128, %v201
    %206 = vst [vmem:[#allocation2] sm:$0xff] %v204
    %207 = vst [vmem:[#allocation2 + $0x8] sm:$0xff] %v205
    %v208 = vld [vmem:[#allocation3] sm:$0xff]
    %v209 = vld [vmem:[#allocation3 + $0x8] sm:$0xff]
    %v210 = vld [vmem:[#allocation3 + $0x10] sm:$0xff]
    %v211 = vld [vmem:[#allocation3 + $0x18] sm:$0xff]
    %212 = vmatprep.subr.mxu0 0.0
    %213 = vmatpush1.xpose.msra.mxu0 %v126
    %214 = vmatprep.subr.mxu0 0.0
    %215 = vmatpush1.xpose.msra.mxu0 %v125
    %216 = vmatprep.subr.mxu0 0.0
    %217 = vmatpush1.xpose.msra.mxu0 %v124
    %218 = vmatprep.subr.mxu0 0.0
    %219 = vmatpush1.xpose.msra.mxu0 %v123
    %220 = vmatprep.subr.mxu0 0.0
    %221 = vmatpush1.xpose.msra.mxu0 %v122
    %222 = vmatprep.subr.mxu0 0.0
    %223 = vmatpush1.xpose.msra.mxu0 %v121
    %224 = vmatprep.subr.mxu0 0.0
    %225 = vmatpush1.xpose.msra.mxu0 %v120
    %226 = vmatprep.subr.mxu0 0.0
    %227 = vmatpush1.xpose.msra.mxu0 %v119
    %228 = vmatprep.subr.mxu0 0.0
    %229 = vmatpush1.xpose.msra.mxu0 %v118
    %230 = vmatprep.subr.mxu0 0.0
    %231 = vmatpush1.xpose.msra.mxu0 %v117
    %232 = vmatprep.subr.mxu0 0.0
    %233 = vmatpush1.xpose.msra.mxu0 %v116
    %234 = vmatprep.subr.mxu0 0.0
    %235 = vmatpush1.xpose.msra.mxu0 %v115
    %236 = vmatprep.subr.mxu0 0.0
    %237 = vmatpush1.xpose.msra.mxu0 %v114
    %238 = vmatprep.subr.mxu0 0.0
    %239 = vmatpush1.xpose.msra.mxu0 %v113
    %240 = vmatprep.subr.mxu0 0.0
    %241 = vmatpush1.xpose.msra.mxu0 %v112
    %242 = vmatprep.subr.mxu0 0.0
    %243 = vmatpush1.xpose.msra.mxu0 %v111
    %244 = vmatprep.subr.mxu0 0.0
    %245 = vmatpush2.xpose.msra.mxu0 0.0
    %246 = vmatprep.subr.mxu0 0.0
    %247 = vmatpush2.xpose.msra.mxu0 0.0
    %248 = vmatprep.subr.mxu0 0.0
    %249 = vmatpush2.xpose.msra.mxu0 0.0
    %250 = vmatprep.subr.mxu0 0.0
    %251 = vmatpush2.xpose.msra.mxu0 0.0
    %252 = vmatprep.subr.mxu0 0.0
    %253 = vmatpush2.xpose.msra.mxu0 0.0
    %254 = vmatprep.subr.mxu0 0.0
    %255 = vmatpush2.xpose.msra.mxu0 0.0
    %256 = vmatprep.subr.mxu0 0.0
    %257 = vmatpush2.xpose.msra.mxu0 0.0
    %258 = vmatprep.subr.mxu0 0.0
    %259 = vmatpush2.xpose.msra.mxu0 0.0
    %260 = vmatprep.subr.mxu0 0.0
    %261 = vmatpush2.xpose.msra.mxu0 0.0
    %262 = vmatprep.subr.mxu0 0.0
    %263 = vmatpush2.xpose.msra.mxu0 0.0
    %264 = vmatprep.subr.mxu0 0.0
    %265 = vmatpush2.xpose.msra.mxu0 0.0
    %266 = vmatprep.subr.mxu0 0.0
    %267 = vmatpush2.xpose.msra.mxu0 0.0
    %268 = vmatprep.subr.mxu0 0.0
    %269 = vmatpush2.xpose.msra.mxu0 0.0
    %270 = vmatprep.subr.mxu0 0.0
    %271 = vmatpush2.xpose.msra.mxu0 0.0
    %272 = vmatprep.subr.mxu0 0.0
    %273 = vmatpush2.xpose.msra.mxu0 0.0
    %274 = vmatprep.subr.mxu0 0.0
    %275 = vmatpush2.xpose.msra.mxu0 0.0
    %276 = vmatprep.mubr.f32.mxu0 0.0
    %277 = vmatmul.mubr.f32.gmra.mxu0 %v107
    %v278 = vpop.f32.mrf.mxu0
    %v279 = vadd.f32 0.0, %v278
    %v280 = vpop.f32.mrf.mxu0
    %281 = vmatprep.mubr.f32.mxu0 0.0
    %282 = vmatmul.mubr.f32.gmra.mxu0 %v108
    %v283 = vpop.f32.mrf.mxu0
    %v284 = vadd.f32 0.0, %v283
    %v285 = vpop.f32.mrf.mxu0
    %286 = vmatprep.mubr.f32.mxu0 0.0
    %287 = vmatmul.mubr.f32.gmra.mxu0 %v109
    %v288 = vpop.f32.mrf.mxu0
    %v289 = vadd.f32 0.0, %v288
    %v290 = vpop.f32.mrf.mxu0
    %291 = vmatprep.mubr.f32.mxu0 0.0
    %292 = vmatmul.mubr.f32.gmra.mxu0 %v110
    %v293 = vpop.f32.mrf.mxu0
    %v294 = vadd.f32 0.0, %v293
    %v295 = vpop.f32.mrf.mxu0
    %296 = vdwg.mxu0
    %v297 = vadd.f32 %v208, %v279
    %v298 = vadd.f32 %v209, %v284
    %v299 = vadd.f32 %v210, %v289
    %v300 = vadd.f32 %v211, %v294
    %301 = vst [vmem:[#allocation3] sm:$0xff] %v297
    %302 = vst [vmem:[#allocation3 + $0x8] sm:$0xff] %v298
    %303 = vst [vmem:[#allocation3 + $0x10] sm:$0xff] %v299
    %304 = vst [vmem:[#allocation3 + $0x18] sm:$0xff] %v300
    // Predicated region
    $region42: #{tpu_custom_call.1} parent=1 // pred_check
      %p305 = pneg %p79
    $region43: #{tpu_custom_call.1} parent=1 // pred_check_branch
      %307 = sbr.rel (%p305) target = $region45
    $region44: #{tpu_custom_call.1} parent=1 // pred_region
      %v308 = vld [vmem:[#allocation2] sm:$0xff]
      %v309 = vld [vmem:[#allocation2 + $0x8] sm:$0xff]
      %v310 = vld [vmem:[%s4] sm:$0x1]
      %v312 = vlaneseq
      %v313 = vshrl.u32 %v312, 7
      %v314 = vsub.s32 0, %v313
      %v315 = vrot.slane %v310, %v314
      %v317 = vadd.f32 %v308, %v315
      %v318 = vadd.f32 %v309, %v315
      %319 = vst [vmem:[#allocation12] sm:$0xff] %v317
      %320 = vst [vmem:[#allocation12 + $0x8] sm:$0xff] %v318
      %v321 = vld [vmem:[#allocation3] sm:$0xff]
      %v322 = vld [vmem:[#allocation3 + $0x8] sm:$0xff]
      %v323 = vld [vmem:[#allocation3 + $0x10] sm:$0xff]
      %v324 = vld [vmem:[#allocation3 + $0x18] sm:$0xff]
      %v325 = vrcp.pop %v323
      %v326 = vmul.f32 %v321, %v325
      %v327 = vrcp.pop %v324
      %v328 = vmul.f32 %v322, %v327
      %329 = vst [vmem:[#allocation13] sm:$0xff] %v326
      %330 = vst [vmem:[#allocation13 + $0x8] sm:$0xff] %v328
    $region45: #{tpu_custom_call.1} parent=1 // pred_fallthru
      _
    // Predicated region
    $region46: #{tpu_custom_call.1} parent=1 // pred_check
      _
    $region47: #{tpu_custom_call.1} parent=1 // pred_check_branch
      %332 = sbr.rel (0) target = $region49
    $region48: #{tpu_custom_call.1} parent=1 // pred_region
      %s334 = ssub.s32 256, 256
      %335 = vsyncadd [#allocation6], %s334
      %s336 = sshll.u32 [#allocation12], 4
      %s337 = int_to_ptr.vmem [resolvable:$true] %s336
      %342 = dma.vmem_to_hbm [thread:$0]  %s337, 256, %s5, [#allocation6], 128, 128, 8
    $region49: #{tpu_custom_call.1} parent=1 // pred_fallthru
      _
    // Predicated region
    $region50: #{tpu_custom_call.1} parent=1 // pred_check
      _
    $region51: #{tpu_custom_call.1} parent=1 // pred_check_branch
      %344 = sbr.rel (0) target = $region53
    $region52: #{tpu_custom_call.1} parent=1 // pred_region
      %s346 = ssub.s32 256, 256
      %347 = vsyncadd [#allocation14], %s346
      %s348 = sshll.u32 [#allocation13], 4
      %s349 = int_to_ptr.vmem [resolvable:$true] %s348
      %354 = dma.vmem_to_hbm [thread:$0]  %s349, 256, %s6, [#allocation14], 128, 128, 8
    $region53: #{tpu_custom_call.1} parent=1 // pred_fallthru
      _
    // Predicated region
    $region54: #{tpu_custom_call.1} parent=1 // pred_check
      _
    $region55: #{tpu_custom_call.1} parent=1 // pred_check_branch
      %356 = sbr.rel (0) target = $region57
    $region56: #{tpu_custom_call.1} parent=1 // pred_region
      %357 = dma.done [#allocation6], 256
    $region57: #{tpu_custom_call.1} parent=1 // pred_fallthru
      _
    // Predicated region
    $region58: #{tpu_custom_call.1} parent=1 // pred_check
      _
    $region59: #{tpu_custom_call.1} parent=1 // pred_check_branch
      %359 = sbr.rel (0) target = $region61
    $region60: #{tpu_custom_call.1} parent=1 // pred_region
      %360 = dma.done [#allocation14], 256
    $region61: #{tpu_custom_call.1} parent=1 // pred_fallthru
      _
    %361 = vsyncpa [#allocation5], 1
    %362 = vsyncpa [#allocation8], 1
    %363 = vsyncpa [#allocation11], 1
    %364 = vsyncpa [#allocation6], 1
    %365 = vsyncpa [#allocation14], 1

</llo_original>
